<compile_context>
chip_gen: v5e
topology: v5e:2x2
jax: 0.10.0
libtpu: 0.0.40
codegen_flags: <defaults>
</compile_context>

<pallas_src>
import jax
import jax.numpy as jnp
from jax import lax
from jax.experimental import pallas as pl
from jax.experimental.pallas import tpu as pltpu

NEG_SLOPE = 0.01   # torch.nn.LeakyReLU default
BN_EPS = 1e-5      # torch.nn.BatchNorm1d default
LANE = 128
SUBLANE = 8


def _leaky_relu(x):
    return jnp.where(x >= 0, x, NEG_SLOPE * x)


def _round_up(x, m):
    return (x + m - 1) // m * m


def _cdiv(a, b):
    return -(-a // b)


def classifier_kernel(xm_ref, xi_ref, xc_ref,
                      wm_ref, wi_ref, wc_ref, b_enc_ref,
                      w1_ref, b1_ref, w2t_ref, b2_ref, out_ref):
    # Fused encoders: three row-split bf16 dots summed into one (tb, e_out)
    # f32 accumulator -- equivalent to concat([msg, img, ctx]) @ blockdiag(W).
    enc = jnp.dot(xm_ref[...], wm_ref[...], preferred_element_type=jnp.float32)
    enc = enc + jnp.dot(xi_ref[...], wi_ref[...],
                        preferred_element_type=jnp.float32)
    enc = enc + jnp.dot(xc_ref[...], wc_ref[...],
                        preferred_element_type=jnp.float32)
    enc = enc + b_enc_ref[...]
    x = _leaky_relu(enc)                 # LeakyReLU (Dropout = id in eval mode)

    # Linear + folded eval-mode BatchNorm (tiny operands; kept in f32).
    h = jnp.dot(x, w1_ref[...], preferred_element_type=jnp.float32) + b1_ref[...]
    h = _leaky_relu(h)

    # Final Linear, transposed: (out_dim, hidden) . (tb, hidden)^T -> (out_dim, tb)
    # so the output block is a lane-dense row instead of a 128-lane padded slab.
    logits = lax.dot_general(w2t_ref[...], h,
                             dimension_numbers=(((1,), (1,)), ((), ())),
                             preferred_element_type=jnp.float32)
    out_ref[...] = logits + b2_ref[...]


def pack_params(params):
    """Host-side packing (glue, not hot path)."""
    wm, bm = params["wm"], params["bm"]
    wi, bi = params["wi"], params["bi"]
    wc, bc = params["wc"], params["bc"]
    em, ei, ec = wm.shape[1], wi.shape[1], wc.shape[1]
    e_out = em + ei + ec

    # Row-split encoder weights: each maps its own input straight into its
    # column range of the embedding concat (zeros elsewhere).  bf16 = MXU-native.
    def place(w, col0):
        full = jnp.zeros((w.shape[0], e_out), jnp.float32)
        return full.at[:, col0:col0 + w.shape[1]].set(w).astype(jnp.bfloat16)

    wm_p = place(wm, 0)
    wi_p = place(wi, em)
    wc_p = place(wc, em + ei)
    b_enc = jnp.concatenate([bm, bi, bc]).reshape(1, e_out).astype(jnp.float32)

    # Fold eval-mode BatchNorm affine into W1 / b1 (numerically identical).
    bn_scale = params["bn_gamma"] / jnp.sqrt(params["bn_var"] + BN_EPS)
    bn_shift = params["bn_beta"] - params["bn_mean"] * bn_scale
    w1 = (params["w1"] * bn_scale[None, :]).astype(jnp.float32)
    b1 = (params["b1"] * bn_scale + bn_shift).reshape(1, -1).astype(jnp.float32)

    # Transposed final layer so the kernel emits (out_dim, tb) lane-dense rows.
    w2t = params["w2"].T.astype(jnp.float32)               # (out_dim, hidden)
    b2 = params["b2"].reshape(-1, 1).astype(jnp.float32)   # (out_dim, 1)

    return dict(wm=wm_p, wi=wi_p, wc=wc_p, b_enc=b_enc,
                w1=w1, b1=b1, w2t=w2t, b2=b2)


def _pick_batch_tile(B, max_tile):
    """Rows per grid step + padded batch.  Tiles are sublane-aligned; when the
    grid has >1 step the tile is 128-aligned so the (out_dim, tb) output block
    stays an unmasked lane-dense store."""
    b8 = _round_up(B, SUBLANE)
    if b8 <= max_tile:
        # Free 2-way split keeps both v7x TensorCores busy when it adds no padding.
        if b8 >= 2 * LANE and b8 % (2 * LANE) == 0:
            return b8 // 2, b8
        return b8, b8                       # single tile; block == full array
    n_tiles = _cdiv(B, max_tile)            # pick tile count first -> minimal padding
    tb = _round_up(_cdiv(B, n_tiles), LANE)
    return tb, _round_up(B, tb)


def classifier_forward(context, last_msg, image, packed, *, max_tile=1024):
    """Fused Classifier forward (eval mode). Inputs f32 (B, feat); returns (B, out_dim)."""
    B = last_msg.shape[0]
    wm, wi, wc = packed["wm"], packed["wi"], packed["wc"]
    b_enc, w1, b1 = packed["b_enc"], packed["w1"], packed["b1"]
    w2t, b2 = packed["w2t"], packed["b2"]
    dm, e_out = wm.shape
    di, dc = wi.shape[0], wc.shape[0]
    hidden = w1.shape[1]
    out_dim = w2t.shape[0]

    tb, b_pad = _pick_batch_tile(B, max_tile)
    grid = (b_pad // tb,)

    def prep(a, d):
        assert a.shape == (B, d), (a.shape, (B, d))
        a = a.astype(jnp.bfloat16)          # halve input-read HBM traffic
        if b_pad != B:
            a = jnp.pad(a, ((0, b_pad - B), (0, 0)))
        return a

    xm = prep(last_msg, dm)
    xi = prep(image, di)
    xc = prep(context, dc)

    operands = (xm, xi, xc, wm, wi, wc, b_enc, w1, b1, w2t, b2)
    flops = 2 * b_pad * ((dm + di + dc) * e_out + e_out * hidden + hidden * out_dim)
    bytes_accessed = int(sum(a.size * a.dtype.itemsize for a in operands)
                         + 4 * out_dim * b_pad)

    def full(a):  # whole-array block (weights stay resident across grid steps)
        return pl.BlockSpec(a.shape, lambda i: (0, 0))

    out = pl.pallas_call(
        classifier_kernel,
        out_shape=jax.ShapeDtypeStruct((out_dim, b_pad), jnp.float32),
        grid=grid,
        in_specs=[
            pl.BlockSpec((tb, dm), lambda i: (i, 0)),    # last_msg tile
            pl.BlockSpec((tb, di), lambda i: (i, 0)),    # image tile
            pl.BlockSpec((tb, dc), lambda i: (i, 0)),    # context tile
            full(wm), full(wi), full(wc), full(b_enc),
            full(w1), full(b1), full(w2t), full(b2),
        ],
        out_specs=pl.BlockSpec((out_dim, tb), lambda i: (0, i)),  # lane-dense row
        compiler_params=pltpu.CompilerParams(
            dimension_semantics=("parallel",)),          # shard tiles on v7x's 2 TCs
        cost_estimate=pl.CostEstimate(flops=flops, transcendentals=0,
                                      bytes_accessed=bytes_accessed),
    )(*operands)

    return out[:, :B].T                                  # (B, out_dim)


def _uniform_linear(key, fan_in, fan_out):
    """Deterministic PyTorch-style Linear init: U(-1/sqrt(fan_in), 1/sqrt(fan_in))."""
    kw, kb = jax.random.split(key)
    bound = 1.0 / jnp.sqrt(fan_in)
    w = jax.random.uniform(kw, (fan_in, fan_out), jnp.float32, -bound, bound)
    b = jax.random.uniform(kb, (fan_out,), jnp.float32, -bound, bound)
    return w, b


if __name__ == "__main__":
    # Config (use_msg = use_image = use_context = True)
    B = 8
    last_msg_input_dim, last_msg_embedding_dim = 32, 16
    img_input_dim, img_embedding_dim = 64, 24
    context_input_dim, context_embedding_dim = 48, 24
    concat_dim = last_msg_embedding_dim + img_embedding_dim + context_embedding_dim  # 64
    hidden_dim = 32
    output_dim = 1

    root = jax.random.PRNGKey(0)
    keys = jax.random.split(root, 10)

    # Deterministic parameters (synthetic, no checkpoint).
    wm, bm = _uniform_linear(keys[0], last_msg_input_dim, last_msg_embedding_dim)
    wi, bi = _uniform_linear(keys[1], img_input_dim, img_embedding_dim)
    wc, bc = _uniform_linear(keys[2], context_input_dim, context_embedding_dim)
    w1, b1 = _uniform_linear(keys[3], concat_dim, hidden_dim)
    w2, b2 = _uniform_linear(keys[4], hidden_dim, output_dim)
    bn_gamma = jnp.ones((hidden_dim,), jnp.float32) + 0.1 * jax.random.normal(keys[5], (hidden_dim,))
    bn_beta = 0.1 * jax.random.normal(keys[6], (hidden_dim,))
    bn_mean = 0.05 * jax.random.normal(keys[7], (hidden_dim,))
    bn_var = jnp.abs(1.0 + 0.1 * jax.random.normal(keys[8], (hidden_dim,)))

    params = dict(wm=wm, bm=bm, wi=wi, bi=bi, wc=wc, bc=bc,
                  w1=w1, b1=b1, w2=w2, b2=b2,
                  bn_gamma=bn_gamma, bn_beta=bn_beta,
                  bn_mean=bn_mean, bn_var=bn_var)
    packed = pack_params(params)

    # Pure-JAX f32 reference (unfused, un-folded math).
    def ref(context, last_msg, image):
        em = last_msg @ wm + bm
        ei = image @ wi + bi
        ec = context @ wc + bc
        x = jnp.concatenate([em, ei, ec], axis=1)
        x = jnp.where(x >= 0, x, NEG_SLOPE * x)
        h = x @ w1 + b1
        h = (h - bn_mean) / jnp.sqrt(bn_var + BN_EPS) * bn_gamma + bn_beta
        h = jnp.where(h >= 0, h, NEG_SLOPE * h)
        return h @ w2 + b2

    # --- Test 1: small batch (single-tile path) ---------------------------------
    ik = jax.random.split(keys[9], 6)
    context_x = jax.random.normal(ik[0], (B, context_input_dim), jnp.float32)
    last_msg_x = jax.random.normal(ik[1], (B, last_msg_input_dim), jnp.float32)
    image_x = jax.random.normal(ik[2], (B, img_input_dim), jnp.float32)

    out = classifier_forward(context_x, last_msg_x, image_x, packed)
    out = jax.block_until_ready(out)
    expected = ref(context_x, last_msg_x, image_x)
    assert out.shape == (B, output_dim), out.shape
    # bf16 input/encoder-weight rounding -> looser tolerance vs. f32 reference.
    assert jnp.allclose(out, expected, atol=2e-2, rtol=2e-2), (out, expected)

    # --- Test 2: larger batch (multi-tile grid + batch padding path) ------------
    B2 = 300
    context_y = jax.random.normal(ik[3], (B2, context_input_dim), jnp.float32)
    last_msg_y = jax.random.normal(ik[4], (B2, last_msg_input_dim), jnp.float32)
    image_y = jax.random.normal(ik[5], (B2, img_input_dim), jnp.float32)

    out2 = classifier_forward(context_y, last_msg_y, image_y, packed, max_tile=128)
    out2 = jax.block_until_ready(out2)
    expected2 = ref(context_y, last_msg_y, image_y)
    assert out2.shape == (B2, output_dim), out2.shape
    assert jnp.allclose(out2, expected2, atol=2e-2, rtol=2e-2), (out2, expected2)

    print("KERNEL_OK")
</pallas_src>

<mosaic_0001>
module attributes {stable_mosaic.version = 11 : i64} {
  func.func @classifier_kernel(%arg0: i32, %arg1: memref<8x32xbf16, #tpu.memory_space<vmem>>, %arg2: memref<8x64xbf16, #tpu.memory_space<vmem>>, %arg3: memref<8x48xbf16, #tpu.memory_space<vmem>>, %arg4: memref<32x64xbf16, #tpu.memory_space<vmem>>, %arg5: memref<64x64xbf16, #tpu.memory_space<vmem>>, %arg6: memref<48x64xbf16, #tpu.memory_space<vmem>>, %arg7: memref<1x64xf32, #tpu.memory_space<vmem>>, %arg8: memref<64x32xf32, #tpu.memory_space<vmem>>, %arg9: memref<1x32xf32, #tpu.memory_space<vmem>>, %arg10: memref<1x32xf32, #tpu.memory_space<vmem>>, %arg11: memref<1x1xf32, #tpu.memory_space<vmem>>, %arg12: memref<1x8xf32, #tpu.memory_space<vmem>>) attributes {dimension_semantics = [#tpu.dimension_semantics<parallel>], iteration_bounds = array<i64: 1>, scalar_prefetch = 0 : i64, scratch_operands = 0 : i64, tpu.core_type = #tpu.core_type<tc>, window_params = [{transform_indices = @transform_0, window_bounds = array<i64: 8, 32>}, {transform_indices = @transform_1, window_bounds = array<i64: 8, 64>}, {transform_indices = @transform_2, window_bounds = array<i64: 8, 48>}, {pipeline_mode = #tpu.pipeline_mode<synchronous>, transform_indices = @transform_3, window_bounds = array<i64: 32, 64>}, {pipeline_mode = #tpu.pipeline_mode<synchronous>, transform_indices = @transform_4, window_bounds = array<i64: 64, 64>}, {pipeline_mode = #tpu.pipeline_mode<synchronous>, transform_indices = @transform_5, window_bounds = array<i64: 48, 64>}, {pipeline_mode = #tpu.pipeline_mode<synchronous>, transform_indices = @transform_6, window_bounds = array<i64: 1, 64>}, {pipeline_mode = #tpu.pipeline_mode<synchronous>, transform_indices = @transform_7, window_bounds = array<i64: 64, 32>}, {pipeline_mode = #tpu.pipeline_mode<synchronous>, transform_indices = @transform_8, window_bounds = array<i64: 1, 32>}, {pipeline_mode = #tpu.pipeline_mode<synchronous>, transform_indices = @transform_9, window_bounds = array<i64: 1, 32>}, {pipeline_mode = #tpu.pipeline_mode<synchronous>, transform_indices = @transform_10, window_bounds = array<i64: 1, 1>}, {transform_indices = @transform_11, window_bounds = array<i64: 1, 8>}]} {
    %c0 = arith.constant 0 : index
    %c0_0 = arith.constant 0 : index
    %0 = vector.load %arg1[%c0, %c0_0] : memref<8x32xbf16, #tpu.memory_space<vmem>>, vector<8x32xbf16>
    %c0_1 = arith.constant 0 : index
    %c0_2 = arith.constant 0 : index
    %1 = vector.load %arg4[%c0_1, %c0_2] : memref<32x64xbf16, #tpu.memory_space<vmem>>, vector<32x64xbf16>
    %cst = arith.constant dense<0.000000e+00> : vector<8x64xf32>
    %2 = tpu.matmul %0, %1, %cst {dimension_numbers = #tpu.dot_dimension_numbers<[1], [0], [0], [1], [0, 0, 1, 1], [], []>} : vector<8x32xbf16>, vector<32x64xbf16>, vector<8x64xf32> -> vector<8x64xf32>
    %c0_3 = arith.constant 0 : index
    %c0_4 = arith.constant 0 : index
    %3 = vector.load %arg2[%c0_3, %c0_4] : memref<8x64xbf16, #tpu.memory_space<vmem>>, vector<8x64xbf16>
    %c0_5 = arith.constant 0 : index
    %c0_6 = arith.constant 0 : index
    %4 = vector.load %arg5[%c0_5, %c0_6] : memref<64x64xbf16, #tpu.memory_space<vmem>>, vector<64x64xbf16>
    %cst_7 = arith.constant dense<0.000000e+00> : vector<8x64xf32>
    %5 = tpu.matmul %3, %4, %cst_7 {dimension_numbers = #tpu.dot_dimension_numbers<[1], [0], [0], [1], [0, 0, 1, 1], [], []>} : vector<8x64xbf16>, vector<64x64xbf16>, vector<8x64xf32> -> vector<8x64xf32>
    %6 = arith.addf %2, %5 : vector<8x64xf32>
    %c0_8 = arith.constant 0 : index
    %c0_9 = arith.constant 0 : index
    %7 = vector.load %arg3[%c0_8, %c0_9] : memref<8x48xbf16, #tpu.memory_space<vmem>>, vector<8x48xbf16>
    %c0_10 = arith.constant 0 : index
    %c0_11 = arith.constant 0 : index
    %8 = vector.load %arg6[%c0_10, %c0_11] : memref<48x64xbf16, #tpu.memory_space<vmem>>, vector<48x64xbf16>
    %cst_12 = arith.constant dense<0.000000e+00> : vector<8x64xf32>
    %9 = tpu.matmul %7, %8, %cst_12 {dimension_numbers = #tpu.dot_dimension_numbers<[1], [0], [0], [1], [0, 0, 1, 1], [], []>} : vector<8x48xbf16>, vector<48x64xbf16>, vector<8x64xf32> -> vector<8x64xf32>
    %10 = arith.addf %6, %9 : vector<8x64xf32>
    %c0_13 = arith.constant 0 : index
    %c0_14 = arith.constant 0 : index
    %11 = vector.load %arg7[%c0_13, %c0_14] : memref<1x64xf32, #tpu.memory_space<vmem>>, vector<1x64xf32>
    %12 = vector.broadcast %11 : vector<1x64xf32> to vector<8x64xf32>
    %13 = arith.addf %10, %12 : vector<8x64xf32>
    %cst_15 = arith.constant 0.000000e+00 : f32
    %14 = vector.broadcast %cst_15 : f32 to vector<8x64xf32>
    %15 = arith.cmpf oge, %13, %14 : vector<8x64xf32>
    %cst_16 = arith.constant 0.00999999977 : f32
    %16 = vector.broadcast %cst_16 : f32 to vector<8x64xf32>
    %17 = arith.mulf %16, %13 : vector<8x64xf32>
    %18 = arith.select %15, %13, %17 : vector<8x64xi1>, vector<8x64xf32>
    %c0_17 = arith.constant 0 : index
    %c0_18 = arith.constant 0 : index
    %19 = vector.load %arg8[%c0_17, %c0_18] : memref<64x32xf32, #tpu.memory_space<vmem>>, vector<64x32xf32>
    %cst_19 = arith.constant dense<0.000000e+00> : vector<8x32xf32>
    %20 = tpu.matmul %18, %19, %cst_19 {dimension_numbers = #tpu.dot_dimension_numbers<[1], [0], [0], [1], [0, 0, 1, 1], [], []>} : vector<8x64xf32>, vector<64x32xf32>, vector<8x32xf32> -> vector<8x32xf32>
    %c0_20 = arith.constant 0 : index
    %c0_21 = arith.constant 0 : index
    %21 = vector.load %arg9[%c0_20, %c0_21] : memref<1x32xf32, #tpu.memory_space<vmem>>, vector<1x32xf32>
    %22 = vector.broadcast %21 : vector<1x32xf32> to vector<8x32xf32>
    %23 = arith.addf %20, %22 : vector<8x32xf32>
    %cst_22 = arith.constant 0.000000e+00 : f32
    %24 = vector.broadcast %cst_22 : f32 to vector<8x32xf32>
    %25 = arith.cmpf oge, %23, %24 : vector<8x32xf32>
    %cst_23 = arith.constant 0.00999999977 : f32
    %26 = vector.broadcast %cst_23 : f32 to vector<8x32xf32>
    %27 = arith.mulf %26, %23 : vector<8x32xf32>
    %28 = arith.select %25, %23, %27 : vector<8x32xi1>, vector<8x32xf32>
    %c0_24 = arith.constant 0 : index
    %c0_25 = arith.constant 0 : index
    %29 = vector.load %arg10[%c0_24, %c0_25] : memref<1x32xf32, #tpu.memory_space<vmem>>, vector<1x32xf32>
    %cst_26 = arith.constant dense<0.000000e+00> : vector<1x8xf32>
    %30 = tpu.matmul %29, %28, %cst_26 {dimension_numbers = #tpu.dot_dimension_numbers<[1], [1], [0], [0], [0, 0, 1, 0], [], []>} : vector<1x32xf32>, vector<8x32xf32>, vector<1x8xf32> -> vector<1x8xf32>
    %c0_27 = arith.constant 0 : index
    %c0_28 = arith.constant 0 : index
    %31 = vector.load %arg11[%c0_27, %c0_28] : memref<1x1xf32, #tpu.memory_space<vmem>>, vector<1x1xf32>
    %32 = vector.broadcast %31 : vector<1x1xf32> to vector<1x8xf32>
    %33 = arith.addf %30, %32 : vector<1x8xf32>
    %c0_29 = arith.constant 0 : index
    %c0_30 = arith.constant 0 : index
    %34 = vector.load %arg12[%c0_29, %c0_30] : memref<1x8xf32, #tpu.memory_space<vmem>>, vector<1x8xf32>
    tpu.vector_store %arg12[%c0_29, %c0_30], %33 {strides = array<i32>} : memref<1x8xf32, #tpu.memory_space<vmem>>, vector<1x8xf32>,
    return
  }
  func.func @transform_0(%arg0: i32) -> (i32, i32) {
    %c0_i32 = arith.constant 0 : i32
    %c0_i32_0 = arith.constant 0 : i32
    return %arg0, %c0_i32 : i32, i32
  }
  func.func @transform_1(%arg0: i32) -> (i32, i32) {
    %c0_i32 = arith.constant 0 : i32
    %c0_i32_0 = arith.constant 0 : i32
    return %arg0, %c0_i32 : i32, i32
  }
  func.func @transform_2(%arg0: i32) -> (i32, i32) {
    %c0_i32 = arith.constant 0 : i32
    %c0_i32_0 = arith.constant 0 : i32
    return %arg0, %c0_i32 : i32, i32
  }
  func.func @transform_3(%arg0: i32) -> (i32, i32) {
    %c0_i32 = arith.constant 0 : i32
    %c0_i32_0 = arith.constant 0 : i32
    %c0_i32_1 = arith.constant 0 : i32
    return %c0_i32, %c0_i32_0 : i32, i32
  }
  func.func @transform_4(%arg0: i32) -> (i32, i32) {
    %c0_i32 = arith.constant 0 : i32
    %c0_i32_0 = arith.constant 0 : i32
    %c0_i32_1 = arith.constant 0 : i32
    return %c0_i32, %c0_i32_0 : i32, i32
  }
  func.func @transform_5(%arg0: i32) -> (i32, i32) {
    %c0_i32 = arith.constant 0 : i32
    %c0_i32_0 = arith.constant 0 : i32
    %c0_i32_1 = arith.constant 0 : i32
    return %c0_i32, %c0_i32_0 : i32, i32
  }
  func.func @transform_6(%arg0: i32) -> (i32, i32) {
    %c0_i32 = arith.constant 0 : i32
    %c0_i32_0 = arith.constant 0 : i32
    %c0_i32_1 = arith.constant 0 : i32
    return %c0_i32, %c0_i32_0 : i32, i32
  }
  func.func @transform_7(%arg0: i32) -> (i32, i32) {
    %c0_i32 = arith.constant 0 : i32
    %c0_i32_0 = arith.constant 0 : i32
    %c0_i32_1 = arith.constant 0 : i32
    return %c0_i32, %c0_i32_0 : i32, i32
  }
  func.func @transform_8(%arg0: i32) -> (i32, i32) {
    %c0_i32 = arith.constant 0 : i32
    %c0_i32_0 = arith.constant 0 : i32
    %c0_i32_1 = arith.constant 0 : i32
    return %c0_i32, %c0_i32_0 : i32, i32
  }
  func.func @transform_9(%arg0: i32) -> (i32, i32) {
    %c0_i32 = arith.constant 0 : i32
    %c0_i32_0 = arith.constant 0 : i32
    %c0_i32_1 = arith.constant 0 : i32
    return %c0_i32, %c0_i32_0 : i32, i32
  }
  func.func @transform_10(%arg0: i32) -> (i32, i32) {
    %c0_i32 = arith.constant 0 : i32
    %c0_i32_0 = arith.constant 0 : i32
    %c0_i32_1 = arith.constant 0 : i32
    return %c0_i32, %c0_i32_0 : i32, i32
  }
  func.func @transform_11(%arg0: i32) -> (i32, i32) {
    %c0_i32 = arith.constant 0 : i32
    %c0_i32_0 = arith.constant 0 : i32
    return %c0_i32, %arg0 : i32, i32
  }
}

</mosaic_0001>

<llo_original>
// kernel: tpu_custom_call.1
$region0: #{tpu_custom_call.1}
  #allocation0 [shape = 'u32[]', space=smem, size = 0x4, offset = 0x4, fixed_abs, tag = 'smem constant byte address 0x4 - core index']
  #allocation1 [shape = 'u32[72,128]{1,0:T(1,128)}', space=vmem, size = 0x9000, scoped, tag = 'internal scratch']
  #allocation2 [shape = 'f32[1,1]{1,0:T(1,128)S(1)}', space=vmem, size = 0x200, scoped, tag = 'scoped memory for tpu_custom_call.1']
  %s0 = inlined_call_operand.vmem [shape: bf16[8,32], index: 0, kind: input, shape index: {}]
  %s1 = inlined_call_operand.vmem [shape: bf16[8,64], index: 1, kind: input, shape index: {}]
  %s2 = inlined_call_operand.vmem [shape: bf16[8,48], index: 2, kind: input, shape index: {}]
  %s3 = inlined_call_operand.vmem [shape: bf16[32,64], index: 3, kind: input, shape index: {}]
  %s4 = inlined_call_operand.vmem [shape: bf16[64,64], index: 4, kind: input, shape index: {}]
  %s5 = inlined_call_operand.vmem [shape: bf16[48,64], index: 5, kind: input, shape index: {}]
  %s6 = inlined_call_operand.vmem [shape: f32[1,64], index: 6, kind: input, shape index: {}]
  %s7 = inlined_call_operand.vmem [shape: f32[64,32], index: 7, kind: input, shape index: {}]
  %s8 = inlined_call_operand.vmem [shape: f32[1,32], index: 8, kind: input, shape index: {}]
  %s9 = inlined_call_operand.vmem [shape: f32[1,32], index: 9, kind: input, shape index: {}]
  %s10 = inlined_call_operand.<no memory space> [shape: f32[1,1], index: 10, kind: input, shape index: {}]
  %s11 = inlined_call_operand.hbm [shape: f32[1,8], index: 11, kind: output, shape index: {}]
  %s12 = sld [smem:[#allocation0]]
  $region54: #{tpu_custom_call.1} parent=0
    _
  %s14 = ssub.s32 1, %s12
  %s15 = scalar_select 0, %s14, %s12
  %v16 = vstv %s10
  %17 = vst [vmem:[#allocation2] sm:$0x1] %v16
  $region1: #{tpu_custom_call.1} parent=0
    #allocation3 [shape = 'u8[512]{0}', space=vmem, size = 0x400, scoped, tag = 'output window, operand 0, single buffered']
    #allocation4 [shape = 's32[1]{0}', space=sflag, size = 0x4, scoped, tag = 'scoped memory for tpu_custom_call.1']
    %18 = vsyncpa [#allocation4], 0
    // Predicated region
    $region2: #{tpu_custom_call.1} parent=1 // pred_check
      _
    $region3: #{tpu_custom_call.1} parent=1 // pred_check_branch
      %20 = sbr.rel (0) target = $region5
    $region4: #{tpu_custom_call.1} parent=1 // pred_region
      _
    $region5: #{tpu_custom_call.1} parent=1 // pred_fallthru
      _
    // Predicated region
    $region6: #{tpu_custom_call.1} parent=1 // pred_check
      _
    $region7: #{tpu_custom_call.1} parent=1 // pred_check_branch
      %22 = sbr.rel (0) target = $region9
    $region8: #{tpu_custom_call.1} parent=1 // pred_region
      _
    $region9: #{tpu_custom_call.1} parent=1 // pred_fallthru
      _
    // Predicated region
    $region10: #{tpu_custom_call.1} parent=1 // pred_check
      _
    $region11: #{tpu_custom_call.1} parent=1 // pred_check_branch
      %24 = sbr.rel (0) target = $region13
    $region12: #{tpu_custom_call.1} parent=1 // pred_region
      _
    $region13: #{tpu_custom_call.1} parent=1 // pred_fallthru
      _
    // Predicated region
    $region14: #{tpu_custom_call.1} parent=1 // pred_check
      _
    $region15: #{tpu_custom_call.1} parent=1 // pred_check_branch
      %26 = sbr.rel (0) target = $region17
    $region16: #{tpu_custom_call.1} parent=1 // pred_region
      _
    $region17: #{tpu_custom_call.1} parent=1 // pred_fallthru
      _
    // Predicated region
    $region18: #{tpu_custom_call.1} parent=1 // pred_check
      _
    $region19: #{tpu_custom_call.1} parent=1 // pred_check_branch
      %28 = sbr.rel (0) target = $region21
    $region20: #{tpu_custom_call.1} parent=1 // pred_region
      _
    $region21: #{tpu_custom_call.1} parent=1 // pred_fallthru
      _
    // Predicated region
    $region22: #{tpu_custom_call.1} parent=1 // pred_check
      _
    $region23: #{tpu_custom_call.1} parent=1 // pred_check_branch
      %30 = sbr.rel (0) target = $region25
    $region24: #{tpu_custom_call.1} parent=1 // pred_region
      _
    $region25: #{tpu_custom_call.1} parent=1 // pred_fallthru
      _
    // Predicated region
    $region26: #{tpu_custom_call.1} parent=1 // pred_check
      _
    $region27: #{tpu_custom_call.1} parent=1 // pred_check_branch
      %32 = sbr.rel (0) target = $region29
    $region28: #{tpu_custom_call.1} parent=1 // pred_region
      _
    $region29: #{tpu_custom_call.1} parent=1 // pred_fallthru
      _
    // Predicated region
    $region30: #{tpu_custom_call.1} parent=1 // pred_check
      _
    $region31: #{tpu_custom_call.1} parent=1 // pred_check_branch
      %34 = sbr.rel (0) target = $region33
    $region32: #{tpu_custom_call.1} parent=1 // pred_region
      _
    $region33: #{tpu_custom_call.1} parent=1 // pred_fallthru
      _
    // Predicated region
    $region34: #{tpu_custom_call.1} parent=1 // pred_check
      _
    $region35: #{tpu_custom_call.1} parent=1 // pred_check_branch
      %36 = sbr.rel (0) target = $region37
    $region36: #{tpu_custom_call.1} parent=1 // pred_region
      _
    $region37: #{tpu_custom_call.1} parent=1 // pred_fallthru
      _
    // Predicated region
    $region38: #{tpu_custom_call.1} parent=1 // pred_check
      _
    $region39: #{tpu_custom_call.1} parent=1 // pred_check_branch
      %38 = sbr.rel (0) target = $region41
    $region40: #{tpu_custom_call.1} parent=1 // pred_region
      _
    $region41: #{tpu_custom_call.1} parent=1 // pred_fallthru
      _
    // Predicated region
    $region42: #{tpu_custom_call.1} parent=1 // pred_check
      _
    $region43: #{tpu_custom_call.1} parent=1 // pred_check_branch
      %40 = sbr.rel (0) target = $region45
    $region44: #{tpu_custom_call.1} parent=1 // pred_region
      _
    $region45: #{tpu_custom_call.1} parent=1 // pred_fallthru
      _
    %v42 = vld [vmem:[%s0] sm:$0xf]
    %v43 = vld [vmem:[%s3] sm:$0xf]
    %v44 = vld [vmem:[%s3 + $0x4] sm:$0xf]
    %v45 = vld [vmem:[%s3 + $0x8] sm:$0xf]
    %v46 = vld [vmem:[%s3 + $0xc] sm:$0xf]
    %v47 = vld [vmem:[%s1] sm:$0xf]
    %v48 = vld [vmem:[%s4] sm:$0xf]
    %v49 = vld [vmem:[%s4 + $0x4] sm:$0xf]
    %v50 = vld [vmem:[%s4 + $0x8] sm:$0xf]
    %v51 = vld [vmem:[%s4 + $0xc] sm:$0xf]
    %v52 = vld [vmem:[%s4 + $0x10] sm:$0xf]
    %v53 = vld [vmem:[%s4 + $0x14] sm:$0xf]
    %v54 = vld [vmem:[%s4 + $0x18] sm:$0xf]
    %v55 = vld [vmem:[%s4 + $0x1c] sm:$0xf]
    %v64 = vunpack.c.l.b16 %v48
    %v65 = vunpack.c.l.b16 %v49
    %v66 = vunpack.c.l.b16 %v50
    %v67 = vunpack.c.l.b16 %v51
    %v68 = vunpack.c.l.b16 %v52
    %v69 = vunpack.c.l.b16 %v53
    %v70 = vunpack.c.l.b16 %v54
    %v71 = vunpack.c.l.b16 %v55
    %v72 = vpack.c.b16 %v65, %v64
    %v73 = vpack.c.b16 %v67, %v66
    %v74 = vpack.c.b16 %v69, %v68
    %v75 = vpack.c.b16 %v71, %v70
    %vm80 = vcmask 523264
    %v82 = vsel %vm80, %v47, 0
    %84 = vmatpush.bf16.msra.mxu0 0
    %85 = vmatpush.bf16.msra.mxu0 0
    %86 = vmatpush.bf16.msra.mxu0 0
    %87 = vmatpush.bf16.msra.mxu0 0
    %88 = vmatpush.bf16.msra.mxu0 %v75
    %89 = vmatpush.bf16.msra.mxu0 %v74
    %90 = vmatpush.bf16.msra.mxu0 %v73
    %91 = vmatpush.bf16.msra.mxu0 %v72
    %92 = vmatmul.bf16.gmra.mxu0 %v82
    %v93 = vpop.f32.mrf.mxu0
    %v94 = vadd.f32 0.0, %v93
    %v95 = vpop.f32.mrf.mxu0
    %96 = vdwg.mxu0
    %v101 = vunpack.c.l.b16 %v43
    %v102 = vunpack.c.l.b16 %v44
    %v103 = vunpack.c.l.b16 %v45
    %v104 = vunpack.c.l.b16 %v46
    %v105 = vpack.c.b16 %v102, %v101
    %v106 = vpack.c.b16 %v104, %v103
    %vm109 = vcmask 261120
    %v111 = vsel %vm109, %v42, 0
    %113 = vmatpush.bf16.msra.mxu0 0
    %114 = vmatpush.bf16.msra.mxu0 0
    %115 = vmatpush.bf16.msra.mxu0 0
    %116 = vmatpush.bf16.msra.mxu0 0
    %117 = vmatpush.bf16.msra.mxu0 0
    %118 = vmatpush.bf16.msra.mxu0 0
    %119 = vmatpush.bf16.msra.mxu0 %v106
    %120 = vmatpush.bf16.msra.mxu0 %v105
    %121 = vmatmul.bf16.gmra.mxu0 %v111
    %v122 = vpop.f32.mrf.mxu0
    %v123 = vadd.f32 %v94, %v122
    %v124 = vpop.f32.mrf.mxu0
    %125 = vdwg.mxu0
    %v126 = vld [vmem:[%s2] sm:$0xf]
    %v127 = vld [vmem:[%s5] sm:$0xf]
    %v128 = vld [vmem:[%s5 + $0x4] sm:$0xf]
    %v129 = vld [vmem:[%s5 + $0x8] sm:$0xf]
    %v130 = vld [vmem:[%s5 + $0xc] sm:$0xf]
    %v131 = vld [vmem:[%s5 + $0x10] sm:$0xf]
    %v132 = vld [vmem:[%s5 + $0x14] sm:$0xf]
    %v139 = vunpack.c.l.b16 %v127
    %v140 = vunpack.c.l.b16 %v128
    %v141 = vunpack.c.l.b16 %v129
    %v142 = vunpack.c.l.b16 %v130
    %v143 = vunpack.c.l.b16 %v131
    %v144 = vunpack.c.l.b16 %v132
    %v145 = vpack.c.b16 %v140, %v139
    %v146 = vpack.c.b16 %v142, %v141
    %v147 = vpack.c.b16 %v144, %v143
    %vm151 = vcmask 392192
    %v153 = vsel %vm151, %v126, 0
    %155 = vmatpush.bf16.msra.mxu0 0
    %156 = vmatpush.bf16.msra.mxu0 0
    %157 = vmatpush.bf16.msra.mxu0 0
    %158 = vmatpush.bf16.msra.mxu0 0
    %159 = vmatpush.bf16.msra.mxu0 0
    %160 = vmatpush.bf16.msra.mxu0 %v147
    %161 = vmatpush.bf16.msra.mxu0 %v146
    %162 = vmatpush.bf16.msra.mxu0 %v145
    %163 = vmatmul.bf16.gmra.mxu0 %v153
    %v164 = vpop.f32.mrf.mxu0
    %v165 = vadd.f32 0.0, %v164
    %v166 = vpop.f32.mrf.mxu0
    %167 = vdwg.mxu0
    %v168 = vadd.f32 %v123, %v165
    %v169 = vld [vmem:[%s6] sm:$0x1]
    %v171 = vperm.slane %v169, 0
    %v173 = vadd.f32 %v168, %v171
    %vm174 = vcmp.ge.f32.partialorder %v173, 0.0
    %v175 = vmul.f32 %v173, 0.01
    %v176 = vsel %vm174, %v173, %v175
    %v177 = vld [vmem:[%s7] sm:$0xff]
    %v178 = vld [vmem:[%s7 + $0x8] sm:$0xff]
    %v179 = vld [vmem:[%s7 + $0x10] sm:$0xff]
    %v180 = vld [vmem:[%s7 + $0x18] sm:$0xff]
    %v181 = vld [vmem:[%s7 + $0x20] sm:$0xff]
    %v182 = vld [vmem:[%s7 + $0x28] sm:$0xff]
    %v183 = vld [vmem:[%s7 + $0x30] sm:$0xff]
    %v184 = vld [vmem:[%s7 + $0x38] sm:$0xff]
    %v185 = vld [vmem:[%s8] sm:$0x1]
    %v187 = vperm.slane %v185, 0
    %v190 = vsel %vm80, %v176, 0
    %192 = vmatpush.msra.mxu0 0.0
    %193 = vmatpush.msra.mxu0 0.0
    %194 = vmatpush.msra.mxu0 0.0
    %195 = vmatpush.msra.mxu0 0.0
    %196 = vmatpush.msra.mxu0 0.0
    %197 = vmatpush.msra.mxu0 0.0
    %198 = vmatpush.msra.mxu0 0.0
    %199 = vmatpush.msra.mxu0 0.0
    %200 = vmatpush.msra.mxu0 %v184
    %201 = vmatpush.msra.mxu0 %v183
    %202 = vmatpush.msra.mxu0 %v182
    %203 = vmatpush.msra.mxu0 %v181
    %204 = vmatpush.msra.mxu0 %v180
    %205 = vmatpush.msra.mxu0 %v179
    %206 = vmatpush.msra.mxu0 %v178
    %207 = vmatpush.msra.mxu0 %v177
    %208 = vmatmul.f32.gmra.mxu0 %v190
    %v209 = vpop.f32.mrf.mxu0
    %v210 = vadd.f32 %v187, %v209
    %211 = vdwg.mxu0
    %vm212 = vcmp.ge.f32.partialorder %v210, 0.0
    %v213 = vmul.f32 %v210, 0.01
    %v214 = vsel %vm212, %v210, %v213
    %v215 = vld [vmem:[%s9] sm:$0x1]
    %v216 = vld [vmem:[#allocation2] sm:$0x1]
    %218 = vset.pattern.permute.xlu0 0
    %219 = vperm.xlu0 %218, %v216
    %v220 = vpop.permute.xlu0 %219
    %v222 = vperm.slane %v220, 0
    %v224 = vsel %vm109, %v215, 0
    %v227 = vsel %vm109, %v214, 0
    %229 = vmatpush.xpose.msra.mxu0 0.0
    %230 = vmatpush.xpose.msra.mxu0 0.0
    %231 = vmatpush.xpose.msra.mxu0 0.0
    %232 = vmatpush.xpose.msra.mxu0 0.0
    %233 = vmatpush.xpose.msra.mxu0 0.0
    %234 = vmatpush.xpose.msra.mxu0 0.0
    %235 = vmatpush.xpose.msra.mxu0 0.0
    %236 = vmatpush.xpose.msra.mxu0 0.0
    %237 = vmatpush.xpose.msra.mxu0 0.0
    %238 = vmatpush.xpose.msra.mxu0 0.0
    %239 = vmatpush.xpose.msra.mxu0 0.0
    %240 = vmatpush.xpose.msra.mxu0 0.0
    %241 = vmatpush.xpose.msra.mxu0 0.0
    %242 = vmatpush.xpose.msra.mxu0 0.0
    %243 = vmatpush.xpose.msra.mxu0 0.0
    %244 = vmatpush.xpose.msra.mxu0 %v227
    %245 = vmatmul.f32.gmra.mxu0 %v224
    %v246 = vpop.f32.mrf.mxu0
    %v247 = vadd.f32 %v222, %v246
    %248 = vdwg.mxu0
    %vm249 = vcmask 57344
    %250 = vst.msk [vmem:[#allocation3] sm:$0x1] %vm249, %v247
    // Predicated region
    $region46: #{tpu_custom_call.1} parent=1 // pred_check
      _
    $region47: #{tpu_custom_call.1} parent=1 // pred_check_branch
      %252 = sbr.rel (0) target = $region49
    $region48: #{tpu_custom_call.1} parent=1 // pred_region
      %254 = vsyncadd [#allocation4], 0
      %s256 = sshll.u32 [#allocation3], 4
      %s257 = int_to_ptr.vmem [resolvable:$true] %s256
      %s258 = sshll.u32 %s11, 4
      %s259 = int_to_ptr.hbm [resolvable:$true] %s258
      %261 = dma.vmem_to_hbm [thread:$0]  %s257, 16, %s259, [#allocation4]
    $region49: #{tpu_custom_call.1} parent=1 // pred_fallthru
      _
    // Predicated region
    $region50: #{tpu_custom_call.1} parent=1 // pred_check
      _
    $region51: #{tpu_custom_call.1} parent=1 // pred_check_branch
      %263 = sbr.rel (0) target = $region53
    $region52: #{tpu_custom_call.1} parent=1 // pred_region
      %265 = dma.done [#allocation4], 16
    $region53: #{tpu_custom_call.1} parent=1 // pred_fallthru
      _
    %266 = vsyncpa [#allocation4], 1

</llo_original>
